<compile_context>
chip_gen: v7x
topology: tpu7x:2x2x1
jax: 0.10.0
libtpu: 0.0.40
codegen_flags: <defaults>
</compile_context>

<pallas_src>
import jax
import jax.numpy as jnp
from jax.experimental import pallas as pl
from jax.experimental.pallas import tpu as pltpu

BN_EPS = 1e-5

_SINGLE_SHOT_BUDGET = 40 * 1024 * 1024   # max block bytes for the no-K-axis path
_VMEM_CAP = 64 * 1024 * 1024             # safe scoped-VMEM cap on v5e/v6e/v7x


def _round_up(x, m):
    return ((x + m - 1) // m) * m


def _pick_tile(padded, target, min_tiles=1):
    """Largest multiple-of-128 divisor of `padded` that is <= target, preferring
    choices that give at least `min_tiles` tiles.  `padded` is a multiple of 128,
    so 128 is always a valid fallback."""
    cands = [d for d in range(128, padded + 1, 128) if padded % d == 0]
    ok = [d for d in cands if d <= target and padded // d >= min_tiles]
    if ok:
        return max(ok)
    ok = [d for d in cands if d <= target]
    if ok:
        return max(ok)
    return cands[0]


# ----------------------------------------------------------------------------
# Kernels
# ----------------------------------------------------------------------------
def _bn_prelu_store(z, gba_ref, o_ref):
    """BatchNorm1d (batch stats, biased variance) + PReLU on a (B, tn) f32 tile."""
    inv_b = 1.0 / z.shape[0]
    mean = jnp.sum(z, axis=0, keepdims=True) * inv_b
    centered = z - mean
    var = jnp.sum(centered * centered, axis=0, keepdims=True) * inv_b
    gamma = gba_ref[0:1, :]
    beta = gba_ref[1:2, :]
    a = gba_ref[2:3, :]                               # PReLU slope (broadcast)
    y = centered * (gamma * jax.lax.rsqrt(var + BN_EPS)) + beta
    o_ref[...] = jnp.where(y > 0, y, a * y).astype(o_ref.dtype)


def _fc_fused_single_kernel(x_ref, w_ref, gba_ref, o_ref):
    z = jnp.dot(x_ref[...], w_ref[...], preferred_element_type=jnp.float32)
    _bn_prelu_store(z, gba_ref, o_ref)


def _fc_linear_single_kernel(x_ref, w_ref, b_ref, o_ref):
    z = jnp.dot(x_ref[...], w_ref[...], preferred_element_type=jnp.float32)
    o_ref[...] = (z + b_ref[...]).astype(o_ref.dtype)


def _fc_fused_ktiled_kernel(x_ref, w_ref, gba_ref, o_ref, acc_ref):
    k = pl.program_id(1)
    prod = jnp.dot(x_ref[...], w_ref[...], preferred_element_type=jnp.float32)

    @pl.when(k == 0)
    def _():
        acc_ref[...] = prod                # direct store: no zero-init pass

    @pl.when(k > 0)
    def _():
        acc_ref[...] += prod

    @pl.when(k == pl.num_programs(1) - 1)
    def _():
        _bn_prelu_store(acc_ref[...], gba_ref, o_ref)


def _fc_linear_ktiled_kernel(x_ref, w_ref, b_ref, o_ref, acc_ref):
    k = pl.program_id(1)
    prod = jnp.dot(x_ref[...], w_ref[...], preferred_element_type=jnp.float32)

    @pl.when(k == 0)
    def _():
        acc_ref[...] = prod

    @pl.when(k > 0)
    def _():
        acc_ref[...] += prod

    @pl.when(k == pl.num_programs(1) - 1)
    def _():
        o_ref[...] = (acc_ref[...] + b_ref[...]).astype(o_ref.dtype)


# ----------------------------------------------------------------------------
# Parameter prep (one-time) + forward wrapper
# ----------------------------------------------------------------------------
def init_fc_block_params(key, in_features, out_features):
    """Deterministic init matching the PyTorch module's init_weight()."""
    std = (2.0 / in_features) ** 0.5      # kaiming_normal_ (fan_in, gain=sqrt(2))
    w_oi = jax.random.normal(key, (out_features, in_features), jnp.float32) * std
    return {
        "w": w_oi.T,                                       # stored (In, Out)
        "b": jnp.zeros((out_features,), jnp.float32),      # fc bias = 0
        "gamma": jnp.ones((out_features,), jnp.float32),   # bn weight = 1
        "beta": jnp.zeros((out_features,), jnp.float32),   # bn bias = 0
        "prelu_a": jnp.array(0.25, jnp.float32),           # PReLU default
    }


def prepare_fc_block_params(params):
    """One-time layout prep: bf16 cast + 128-padding of W, packed BN/PReLU params.

    Do this once (e.g. after init / weight load), NOT per forward call."""
    In, Out = params["w"].shape
    in_p = _round_up(In, 128)
    out_p = _round_up(Out, 128)

    w_b = params["w"].astype(jnp.bfloat16)
    w_b = jnp.pad(w_b, ((0, in_p - In), (0, out_p - Out)))

    b2 = jnp.pad(params["b"].astype(jnp.float32), (0, out_p - Out)).reshape(1, out_p)

    gamma = jnp.pad(params["gamma"].astype(jnp.float32), (0, out_p - Out))
    beta = jnp.pad(params["beta"].astype(jnp.float32), (0, out_p - Out))
    a_row = jnp.pad(
        jnp.broadcast_to(params["prelu_a"].astype(jnp.float32), (Out,)),
        (0, out_p - Out),
    )
    gba = jnp.stack([gamma, beta, a_row], axis=0)          # (3, out_p)

    return {"w_b": w_b, "b2": b2, "gba": gba,
            "in_features": In, "out_features": Out}


def fc_block_forward(x, prepared, out=False, *, tile_n=512, tile_k=512,
                     out_dtype=jnp.float32, _force_k_tiled=False):
    """Forward pass of FC_block.

    x: (batch, in_features) float
    prepared: output of prepare_fc_block_params()
    out=False -> PReLU(BN(Linear(x)));  out=True -> Linear(x) only.
    """
    B, In = x.shape
    assert In == prepared["in_features"]
    Out = prepared["out_features"]
    w_b = prepared["w_b"]
    in_p, out_p = w_b.shape

    x_b = x.astype(jnp.bfloat16)
    if in_p != In:
        x_b = jnp.pad(x_b, ((0, 0), (0, in_p - In)))

    osz = jnp.dtype(out_dtype).itemsize
    tn = _pick_tile(out_p, tile_n, min_tiles=2)   # >=2 out tiles for v7x megacore

    # VMEM budget for the single-shot (no K axis) path: double-buffered x / W /
    # output blocks + small per-feature params.
    single_need = (2 * B * in_p * 2 + 2 * in_p * tn * 2
                   + 2 * B * tn * osz + 2 * 8 * tn * 4)
    single_shot = (not _force_k_tiled) and single_need <= _SINGLE_SHOT_BUDGET

    if single_shot:
        grid = (out_p // tn,)
        dims = ("parallel",)
        need = single_need
        x_spec = pl.BlockSpec((B, in_p), lambda j: (0, 0))
        w_spec = pl.BlockSpec((in_p, tn), lambda j: (0, j))
        o_spec = pl.BlockSpec((B, tn), lambda j: (0, j))
        p_map = lambda j: (0, j)
        scratch = []
    else:
        tk = _pick_tile(in_p, tile_k)

        def _ktiled_need(tk_, tn_):
            return (2 * B * tk_ * 2 + 2 * tk_ * tn_ * 2 + 2 * B * tn_ * osz
                    + B * tn_ * 4 + 2 * 8 * tn_ * 4)

        # Shrink tiles (tk first, then tn) until the blocks + f32 acc fit VMEM.
        while _ktiled_need(tk, tn) > _SINGLE_SHOT_BUDGET and (tk > 128 or tn > 128):
            if tk > 128:
                tk = _pick_tile(in_p, tk // 2)
            else:
                tn = _pick_tile(out_p, tn // 2, min_tiles=2)
        need = _ktiled_need(tk, tn)

        grid = (out_p // tn, in_p // tk)          # Out "parallel", K "arbitrary"
        dims = ("parallel", "arbitrary")
        x_spec = pl.BlockSpec((B, tk), lambda j, k: (0, k))
        # If profiling shows exposed weight DMA, try pipeline_mode=pl.Buffered(3).
        w_spec = pl.BlockSpec((tk, tn), lambda j, k: (k, j))
        o_spec = pl.BlockSpec((B, tn), lambda j, k: (0, j))
        p_map = lambda j, k: (0, j)
        scratch = [pltpu.VMEM((B, tn), jnp.float32)]

    vmem_limit = int(min(max(need + 4 * 1024 * 1024, 16 * 1024 * 1024), _VMEM_CAP))
    cparams = pltpu.CompilerParams(dimension_semantics=dims,
                                   vmem_limit_bytes=vmem_limit)

    if out:
        kern = _fc_linear_single_kernel if single_shot else _fc_linear_ktiled_kernel
        y = pl.pallas_call(
            kern,
            out_shape=jax.ShapeDtypeStruct((B, out_p), out_dtype),
            grid=grid,
            in_specs=[x_spec, w_spec, pl.BlockSpec((1, tn), p_map)],
            out_specs=o_spec,
            scratch_shapes=scratch,
            compiler_params=cparams,
        )(x_b, w_b, prepared["b2"])
    else:
        kern = _fc_fused_single_kernel if single_shot else _fc_fused_ktiled_kernel
        y = pl.pallas_call(
            kern,
            out_shape=jax.ShapeDtypeStruct((B, out_p), out_dtype),
            grid=grid,
            in_specs=[x_spec, w_spec, pl.BlockSpec((3, tn), p_map)],
            out_specs=o_spec,
            scratch_shapes=scratch,
            compiler_params=cparams,
        )(x_b, w_b, prepared["gba"])

    return y[:, :Out]


# ----------------------------------------------------------------------------
# Self-test
# ----------------------------------------------------------------------------
if __name__ == "__main__":
    key = jax.random.PRNGKey(0)
    k_w, k_x = jax.random.split(key)

    batch, in_features, out_features = 8, 320, 320   # ragged -> exercises 128-pad
    raw = init_fc_block_params(k_w, in_features, out_features)
    prepared = prepare_fc_block_params(raw)
    x = jax.random.normal(k_x, (batch, in_features), jnp.float32)

    # pure-JAX reference with the same bf16 operand rounding as the kernel
    xb = x.astype(jnp.bfloat16)
    wb = raw["w"].astype(jnp.bfloat16)
    z_ref = jnp.dot(xb, wb, preferred_element_type=jnp.float32) + raw["b"]
    mean = z_ref.mean(axis=0, keepdims=True)
    var = ((z_ref - mean) ** 2).mean(axis=0, keepdims=True)
    bn = raw["gamma"] * (z_ref - mean) / jnp.sqrt(var + BN_EPS) + raw["beta"]
    ref = jnp.where(bn > 0, bn, raw["prelu_a"] * bn)

    # 1) fused path (single-shot, no K axis): PReLU(BN(Linear(x)))
    y = fc_block_forward(x, prepared, out=False)
    jax.block_until_ready(y)
    assert y.shape == (batch, out_features)
    assert jnp.allclose(y, ref, atol=2e-3, rtol=2e-3)

    # 2) out=True path: Linear only
    y_lin = fc_block_forward(x, prepared, out=True)
    jax.block_until_ready(y_lin)
    assert y_lin.shape == (batch, out_features)
    assert jnp.allclose(y_lin, z_ref, atol=2e-3, rtol=2e-3)

    # 3) K-tiled fallback path (forced), exercises the accumulator kernels
    y_k = fc_block_forward(x, prepared, out=False,
                           tile_n=128, tile_k=128, _force_k_tiled=True)
    jax.block_until_ready(y_k)
    assert jnp.allclose(y_k, ref, atol=2e-3, rtol=2e-3)
    y_lin_k = fc_block_forward(x, prepared, out=True,
                               tile_n=128, tile_k=128, _force_k_tiled=True)
    jax.block_until_ready(y_lin_k)
    assert jnp.allclose(y_lin_k, z_ref, atol=2e-3, rtol=2e-3)

    # 4) bf16-output variant (for a bf16 consumer layer)
    y_bf16 = fc_block_forward(x, prepared, out=False, out_dtype=jnp.bfloat16)
    jax.block_until_ready(y_bf16)
    assert y_bf16.dtype == jnp.bfloat16
    assert jnp.allclose(y_bf16.astype(jnp.float32), ref, atol=3e-2, rtol=3e-2)

    print("KERNEL_OK")
</pallas_src>

<mosaic_0001>
module attributes {stable_mosaic.version = 11 : i64} {
  func.func @_fc_fused_single_kernel(%arg0: i32, %arg1: memref<8x384xbf16, #tpu.memory_space<vmem>>, %arg2: memref<384x128xbf16, #tpu.memory_space<vmem>>, %arg3: memref<3x128xf32, #tpu.memory_space<vmem>>, %arg4: memref<8x128xf32, #tpu.memory_space<vmem>>) attributes {dimension_semantics = [#tpu.dimension_semantics<parallel>], iteration_bounds = array<i64: 3>, scalar_prefetch = 0 : i64, scratch_operands = 0 : i64, tpu.core_type = #tpu.core_type<tc>, window_params = [{pipeline_mode = #tpu.pipeline_mode<synchronous>, transform_indices = @transform_0, window_bounds = array<i64: 8, 384>}, {transform_indices = @transform_1, window_bounds = array<i64: 384, 128>}, {transform_indices = @transform_2, window_bounds = array<i64: 3, 128>}, {transform_indices = @transform_3, window_bounds = array<i64: 8, 128>}]} {
    %c0 = arith.constant 0 : index
    %c0_0 = arith.constant 0 : index
    %0 = vector.load %arg1[%c0, %c0_0] : memref<8x384xbf16, #tpu.memory_space<vmem>>, vector<8x384xbf16>
    %c0_1 = arith.constant 0 : index
    %c0_2 = arith.constant 0 : index
    %1 = vector.load %arg2[%c0_1, %c0_2] : memref<384x128xbf16, #tpu.memory_space<vmem>>, vector<384x128xbf16>
    %cst = arith.constant dense<0.000000e+00> : vector<8x128xf32>
    %2 = tpu.matmul %0, %1, %cst {dimension_numbers = #tpu.dot_dimension_numbers<[1], [0], [0], [1], [0, 0, 1, 1], [], []>} : vector<8x384xbf16>, vector<384x128xbf16>, vector<8x128xf32> -> vector<8x128xf32>
    %cst_3 = arith.constant dense<0.000000e+00> : vector<128xf32>
    %3 = vector.multi_reduction <add>, %2, %cst_3 [0] : vector<8x128xf32> to vector<128xf32>
    %4 = vector.shape_cast %3 : vector<128xf32> to vector<1x128xf32>
    %cst_4 = arith.constant 1.250000e-01 : f32
    %5 = vector.broadcast %cst_4 : f32 to vector<1x128xf32>
    %6 = arith.mulf %4, %5 : vector<1x128xf32>
    %7 = vector.broadcast %6 : vector<1x128xf32> to vector<8x128xf32>
    %8 = arith.subf %2, %7 : vector<8x128xf32>
    %9 = arith.mulf %8, %8 : vector<8x128xf32>
    %cst_5 = arith.constant dense<0.000000e+00> : vector<128xf32>
    %10 = vector.multi_reduction <add>, %9, %cst_5 [0] : vector<8x128xf32> to vector<128xf32>
    %11 = vector.shape_cast %10 : vector<128xf32> to vector<1x128xf32>
    %cst_6 = arith.constant 1.250000e-01 : f32
    %12 = vector.broadcast %cst_6 : f32 to vector<1x128xf32>
    %13 = arith.mulf %11, %12 : vector<1x128xf32>
    %c0_7 = arith.constant 0 : index
    %c0_8 = arith.constant 0 : index
    %14 = vector.load %arg3[%c0_7, %c0_8] : memref<3x128xf32, #tpu.memory_space<vmem>>, vector<1x128xf32>
    %c1 = arith.constant 1 : index
    %c0_9 = arith.constant 0 : index
    %15 = vector.load %arg3[%c1, %c0_9] : memref<3x128xf32, #tpu.memory_space<vmem>>, vector<1x128xf32>
    %c2 = arith.constant 2 : index
    %c0_10 = arith.constant 0 : index
    %16 = vector.load %arg3[%c2, %c0_10] : memref<3x128xf32, #tpu.memory_space<vmem>>, vector<1x128xf32>
    %cst_11 = arith.constant 9.99999974E-6 : f32
    %17 = vector.broadcast %cst_11 : f32 to vector<1x128xf32>
    %18 = arith.addf %13, %17 : vector<1x128xf32>
    %19 = math.rsqrt %18 : vector<1x128xf32>
    %20 = arith.mulf %14, %19 : vector<1x128xf32>
    %21 = vector.broadcast %20 : vector<1x128xf32> to vector<8x128xf32>
    %22 = arith.mulf %8, %21 : vector<8x128xf32>
    %23 = vector.broadcast %15 : vector<1x128xf32> to vector<8x128xf32>
    %24 = arith.addf %22, %23 : vector<8x128xf32>
    %cst_12 = arith.constant 0.000000e+00 : f32
    %25 = vector.broadcast %cst_12 : f32 to vector<8x128xf32>
    %26 = arith.cmpf ogt, %24, %25 : vector<8x128xf32>
    %27 = vector.broadcast %16 : vector<1x128xf32> to vector<8x128xf32>
    %28 = arith.mulf %27, %24 : vector<8x128xf32>
    %29 = arith.select %26, %24, %28 : vector<8x128xi1>, vector<8x128xf32>
    %c0_13 = arith.constant 0 : index
    %c0_14 = arith.constant 0 : index
    %30 = vector.load %arg4[%c0_13, %c0_14] : memref<8x128xf32, #tpu.memory_space<vmem>>, vector<8x128xf32>
    tpu.vector_store %arg4[%c0_13, %c0_14], %29 {strides = array<i32>} : memref<8x128xf32, #tpu.memory_space<vmem>>, vector<8x128xf32>,
    return
  }
  func.func @transform_0(%arg0: i32) -> (i32, i32) {
    %c0_i32 = arith.constant 0 : i32
    %c0_i32_0 = arith.constant 0 : i32
    %c0_i32_1 = arith.constant 0 : i32
    return %c0_i32, %c0_i32_0 : i32, i32
  }
  func.func @transform_1(%arg0: i32) -> (i32, i32) {
    %c0_i32 = arith.constant 0 : i32
    %c0_i32_0 = arith.constant 0 : i32
    return %c0_i32, %arg0 : i32, i32
  }
  func.func @transform_2(%arg0: i32) -> (i32, i32) {
    %c0_i32 = arith.constant 0 : i32
    %c0_i32_0 = arith.constant 0 : i32
    return %c0_i32, %arg0 : i32, i32
  }
  func.func @transform_3(%arg0: i32) -> (i32, i32) {
    %c0_i32 = arith.constant 0 : i32
    %c0_i32_0 = arith.constant 0 : i32
    return %c0_i32, %arg0 : i32, i32
  }
}

</mosaic_0001>

<llo_original>
// kernel: tpu_custom_call.1
$region0: #{tpu_custom_call.1}
  #allocation0 [shape = 'u32[]', space=smem, size = 0x4, offset = 0x4, fixed_abs, tag = 'smem constant byte address 0x4 - core index']
  #allocation1 [shape = 'u32[144,128]{1,0:T(1,128)}', space=vmem, size = 0x12000, scoped, tag = 'internal scratch']
  %s0 = inlined_call_operand.hbm [shape: bf16[8,384], index: 0, kind: input, shape index: {}]
  %s1 = inlined_call_operand.hbm [shape: bf16[384,384], index: 1, kind: input, shape index: {}]
  %s2 = inlined_call_operand.hbm [shape: f32[3,384], index: 2, kind: input, shape index: {}]
  %s3 = inlined_call_operand.hbm [shape: f32[8,384], index: 3, kind: output, shape index: {}]
  %s4 = sld [smem:[#allocation0]]
  $region57: #{tpu_custom_call.1} parent=0
    _
  %s6 = ssub.s32 1, %s4
  %s7 = scalar_select 0, %s6, %s4
  $region1: #{tpu_custom_call.1} parent=0
    #allocation2 [shape = 'u8[6144]{0}', space=vmem, size = 0x1800, scoped, tag = 'input window, operand 0, single buffered']
    #allocation3 [shape = 's32[2]{0}', space=sflag, size = 0x8, scoped, tag = 'scoped memory for tpu_custom_call.1']
    #allocation4 [shape = 's32[2]{0}', space=sflag, size = 0x8, scoped, tag = 'scoped memory for tpu_custom_call.1']
    #allocation5 [shape = 'u8[196608]{0}', space=vmem, size = 0x30000, scoped, tag = 'input window, operand 1']
    #allocation6 [shape = 's32[2]{0}', space=sflag, size = 0x8, scoped, tag = 'scoped memory for tpu_custom_call.1']
    #allocation7 [shape = 'u8[4096]{0}', space=vmem, size = 0x1000, scoped, tag = 'input window, operand 2']
    #allocation8 [shape = 'u8[8192]{0}', space=vmem, size = 0x2000, scoped, tag = 'output window, operand 0']
    %8 = vsyncpa [#allocation3], 0
    %9 = vsyncpa [#allocation6], 0
    %s10 = scalar_lea.sflag [#allocation6], 1
    %11 = vsyncpa %s10, 0
    %12 = vsyncpa [#allocation4], 0
    %s13 = scalar_lea.sflag [#allocation4], 1
    %14 = vsyncpa %s13, 0
    loop: start=0, step=1, limit=5
    $region2: #{tpu_custom_call.1} parent=1 // loop_pre_header
      _
    $region3: #{tpu_custom_call.1} parent=1 // loop_header
      %s16 = sphi 0, %s20
      %p17 = scmp.ge.s32.totalorder %s16, 5
      %s24 = sphi 0, %s24
      %s26 = sphi 0, %s24
      %s27 = sphi 0, %s26
      %s41 = sphi 0, %s27
      %s47 = sphi 0, %s49
      %s50 = sphi 0, %s47
      %s51 = sphi 0, %s50
      %s67 = sphi 0, %s51
      %s73 = sphi 0, %s75
      %s76 = sphi 0, %s73
      %s77 = sphi 0, %s76
      %s93 = sphi 0, %s77
      %s99 = sphi 0, %s101
      %s102 = sphi 0, %s99
      %s103 = sphi 0, %s102
      %s119 = sphi 0, %s103
    $region4: #{tpu_custom_call.1} parent=1 // loop_header_branch
      %19 = sbr.rel (%p17) target = $region8
    $region5: #{tpu_custom_call.1} parent=1 // loop_body
      %s21 = ssub.s32 %s16, 1
      %s22 = ssub.s32 %s16, 2
      %s23 = sadd.s32 %s16, 1
      %s25 = sadd.s32 %s24, 1
      %p28 = scmp.eq.s32.totalorder %s16, 2
      %p29 = scmp.ne.s32.totalorder %s24, %s26
      %p30 = scmp.eq.s32.totalorder %s16, 0
      %p31 = por %p29, %p30
      %p32 = scmp.ne.s32.totalorder %s24, %s26
      %p33 = scmp.eq.s32.totalorder %s21, 2
      %p34 = por %p32, %p33
      %p35 = scmp.ne.s32.totalorder %s26, %s27
      %p36 = scmp.eq.s32.totalorder %s21, 0
      %p37 = por %p35, %p36
      %p38 = scmp.ne.s32.totalorder %s26, %s27
      %p39 = scmp.eq.s32.totalorder %s22, 2
      %p40 = por %p38, %p39
      %p42 = scmp.ne.s32.totalorder %s27, %s41
      %p43 = scmp.eq.s32.totalorder %s22, 0
      %p44 = por %p42, %p43
      %s45 = ssub.s32 %s16, %s23
      %p46 = scmp.eq.s32.totalorder %s45, 0
      %s48 = sadd.s32 %s47, 1
      %s49 = scalar_select %p46, %s47, %s48
      %p52 = pneg %p46
      %p53 = scmp.eq.s32.totalorder %s16, 2
      %p54 = por %p52, %p53
      %p55 = scmp.ne.s32.totalorder %s47, %s50
      %p56 = scmp.eq.s32.totalorder %s16, 0
      %p57 = por %p55, %p56
      %p58 = scmp.ne.s32.totalorder %s47, %s50
      %p59 = scmp.eq.s32.totalorder %s21, 2
      %p60 = por %p58, %p59
      %p61 = scmp.ne.s32.totalorder %s50, %s51
      %p62 = scmp.eq.s32.totalorder %s21, 0
      %p63 = por %p61, %p62
      %p64 = scmp.ne.s32.totalorder %s50, %s51
      %p65 = scmp.eq.s32.totalorder %s22, 2
      %p66 = por %p64, %p65
      %p68 = scmp.ne.s32.totalorder %s51, %s67
      %p69 = scmp.eq.s32.totalorder %s22, 0
      %p70 = por %p68, %p69
      %s71 = ssub.s32 %s16, %s23
      %p72 = scmp.eq.s32.totalorder %s71, 0
      %s74 = sadd.s32 %s73, 1
      %s75 = scalar_select %p72, %s73, %s74
      %p78 = pneg %p72
      %p79 = scmp.eq.s32.totalorder %s16, 2
      %p80 = por %p78, %p79
      %p81 = scmp.ne.s32.totalorder %s73, %s76
      %p82 = scmp.eq.s32.totalorder %s16, 0
      %p83 = por %p81, %p82
      %p84 = scmp.ne.s32.totalorder %s73, %s76
      %p85 = scmp.eq.s32.totalorder %s21, 2
      %p86 = por %p84, %p85
      %p87 = scmp.ne.s32.totalorder %s76, %s77
      %p88 = scmp.eq.s32.totalorder %s21, 0
      %p89 = por %p87, %p88
      %p90 = scmp.ne.s32.totalorder %s76, %s77
      %p91 = scmp.eq.s32.totalorder %s22, 2
      %p92 = por %p90, %p91
      %p94 = scmp.ne.s32.totalorder %s77, %s93
      %p95 = scmp.eq.s32.totalorder %s22, 0
      %p96 = por %p94, %p95
      %s97 = ssub.s32 %s16, %s23
      %p98 = scmp.eq.s32.totalorder %s97, 0
      %s100 = sadd.s32 %s99, 1
      %s101 = scalar_select %p98, %s99, %s100
      %p104 = pneg %p98
      %p105 = scmp.eq.s32.totalorder %s16, 2
      %p106 = por %p104, %p105
      %p107 = scmp.ne.s32.totalorder %s99, %s102
      %p108 = scmp.eq.s32.totalorder %s16, 0
      %p109 = por %p107, %p108
      %p110 = scmp.ne.s32.totalorder %s99, %s102
      %p111 = scmp.eq.s32.totalorder %s21, 2
      %p112 = por %p110, %p111
      %p113 = scmp.ne.s32.totalorder %s102, %s103
      %p114 = scmp.eq.s32.totalorder %s21, 0
      %p115 = por %p113, %p114
      %p116 = scmp.ne.s32.totalorder %s102, %s103
      %p117 = scmp.eq.s32.totalorder %s22, 2
      %p118 = por %p116, %p117
      %p120 = scmp.ne.s32.totalorder %s103, %s119
      %p121 = scmp.eq.s32.totalorder %s22, 0
      %p122 = por %p120, %p121
      %p123 = scmp.le.s32.totalorder 1, %s16
      %p124 = scmp.lt.s32.totalorder %s16, 4
      %p125 = pnand %p123, %p124
      %p126 = pneg %p125
      // Predicated region
      $region9: #{tpu_custom_call.1} parent=5 // pred_check
        _
      $region10: #{tpu_custom_call.1} parent=5 // pred_check_branch
        %128 = sbr.rel (%p125) target = $region12
      $region11: #{tpu_custom_call.1} parent=5 // pred_region
        %s129 = ssub.s32 %s16, 1
        // Predicated region
        $region13: #{tpu_custom_call.1} parent=11 // pred_check
          %p130 = pneg %p37
        $region14: #{tpu_custom_call.1} parent=11 // pred_check_branch
          %132 = sbr.rel (%p130) target = $region16
        $region15: #{tpu_custom_call.1} parent=11 // pred_region
          %s134 = ssub.s32 192, 192
          %135 = vsyncadd [#allocation3], %s134
          %s137 = sshll.u32 [#allocation2], 4
          %s138 = int_to_ptr.vmem [resolvable:$true] %s137
          %140 = dma.hbm_to_vmem [thread:$0]  %s0, 192, %s138, [#allocation3]
        $region16: #{tpu_custom_call.1} parent=11 // pred_fallthru
          _
      $region12: #{tpu_custom_call.1} parent=5 // pred_fallthru
        _
      %p141 = scmp.lt.s32.totalorder %s16, 3
      // Predicated region
      $region17: #{tpu_custom_call.1} parent=5 // pred_check
        %p142 = pneg %p141
      $region18: #{tpu_custom_call.1} parent=5 // pred_check_branch
        %144 = sbr.rel (%p142) target = $region20
      $region19: #{tpu_custom_call.1} parent=5 // pred_region
        // Predicated region
        $region21: #{tpu_custom_call.1} parent=19 // pred_check
          %p145 = pneg %p57
        $region22: #{tpu_custom_call.1} parent=19 // pred_check_branch
          %147 = sbr.rel (%p145) target = $region24
        $region23: #{tpu_custom_call.1} parent=19 // pred_region
          %s148 = sand.u32 %s16, 1
          %s149 = scalar_lea.sflag [#allocation6], %s148
          %s150 = sand.u32 %s47, 1
          %s151 = smul.addr %s150, 192
          %s152 = scalar_lea.vmem [#allocation5], %s151
          %s154 = ssub.s32 3072, 3072
          %155 = vsyncadd %s149, %s154
          %s156 = smul.addr %s16, 64
          %s157 = scalar_lea.hbm %s1, %s156
          %s158 = sshll.u32 %s152, 4
          %s159 = int_to_ptr.vmem [resolvable:$true] %s158
          %164 = dma.hbm_to_vmem [thread:$0]  %s157, 3072, %s159, %s149, 192, 64, 4
        $region24: #{tpu_custom_call.1} parent=19 // pred_fallthru
          _
        // Predicated region
        $region25: #{tpu_custom_call.1} parent=19 // pred_check
          %p165 = pneg %p83
        $region26: #{tpu_custom_call.1} parent=19 // pred_check_branch
          %167 = sbr.rel (%p165) target = $region28
        $region27: #{tpu_custom_call.1} parent=19 // pred_region
          %s168 = sand.u32 %s16, 1
          %s169 = scalar_lea.sflag [#allocation6], %s168
          %s170 = sand.u32 %s73, 1
          %s171 = smul.addr %s170, 4
          %s172 = scalar_lea.vmem [#allocation7], %s171
          %s174 = ssub.s32 64, 64
          %175 = vsyncadd %s169, %s174
          %s176 = smul.addr %s16, 64
          %s177 = scalar_lea.hbm %s2, %s176
          %s179 = sshll.u32 %s172, 4
          %s180 = int_to_ptr.vmem [resolvable:$true] %s179
          %182 = dma.hbm_to_vmem [thread:$0]  %s177, 64, %s180, %s169
        $region28: #{tpu_custom_call.1} parent=19 // pred_fallthru
          _
      $region20: #{tpu_custom_call.1} parent=5 // pred_fallthru
        _
      %p183 = scmp.le.s32.totalorder 1, %s16
      %p184 = scmp.lt.s32.totalorder %s16, 4
      %p185 = pnand %p183, %p184
      %p186 = pneg %p185
      // Predicated region
      $region29: #{tpu_custom_call.1} parent=5 // pred_check
        _
      $region30: #{tpu_custom_call.1} parent=5 // pred_check_branch
        %188 = sbr.rel (%p185) target = $region32
      $region31: #{tpu_custom_call.1} parent=5 // pred_region
        %s189 = ssub.s32 %s16, 1
        // Predicated region
        $region33: #{tpu_custom_call.1} parent=31 // pred_check
          %p190 = pneg %p37
        $region34: #{tpu_custom_call.1} parent=31 // pred_check_branch
          %192 = sbr.rel (%p190) target = $region36
        $region35: #{tpu_custom_call.1} parent=31 // pred_region
          %193 = dma.done [#allocation3], 192
        $region36: #{tpu_custom_call.1} parent=31 // pred_fallthru
          _
        %s194 = sand.u32 %s21, 1
        %s195 = scalar_lea.sflag [#allocation6], %s194
        %s196 = sand.u32 %s50, 1
        %s197 = smul.addr %s196, 192
        %s198 = scalar_lea.vmem [#allocation5], %s197
        // Predicated region
        $region37: #{tpu_custom_call.1} parent=31 // pred_check
          %p199 = pneg %p63
        $region38: #{tpu_custom_call.1} parent=31 // pred_check_branch
          %201 = sbr.rel (%p199) target = $region40
        $region39: #{tpu_custom_call.1} parent=31 // pred_region
          %202 = dma.done %s195, 3072
        $region40: #{tpu_custom_call.1} parent=31 // pred_fallthru
          _
        %s203 = sand.u32 %s21, 1
        %s204 = scalar_lea.sflag [#allocation6], %s203
        %s205 = sand.u32 %s76, 1
        %s206 = smul.addr %s205, 4
        %s207 = scalar_lea.vmem [#allocation7], %s206
        // Predicated region
        $region41: #{tpu_custom_call.1} parent=31 // pred_check
          %p208 = pneg %p89
        $region42: #{tpu_custom_call.1} parent=31 // pred_check_branch
          %210 = sbr.rel (%p208) target = $region44
        $region43: #{tpu_custom_call.1} parent=31 // pred_region
          %211 = dma.done %s204, 64
        $region44: #{tpu_custom_call.1} parent=31 // pred_fallthru
          _
        %p212 = pneg %p37
        %p213 = pneg %p34
        %s214 = sand.u32 %s21, 1
        %s215 = scalar_lea.sflag [#allocation6], %s214
        %s216 = sand.u32 %s50, 1
        %s217 = smul.addr %s216, 192
        %s218 = scalar_lea.vmem [#allocation5], %s217
        %p219 = pneg %p63
        %p220 = pneg %p60
        %s221 = sand.u32 %s21, 1
        %s222 = scalar_lea.sflag [#allocation6], %s221
        %s223 = sand.u32 %s76, 1
        %s224 = smul.addr %s223, 4
        %s225 = scalar_lea.vmem [#allocation7], %s224
        %p226 = pneg %p89
        %p227 = pneg %p86
        %p228 = pneg %p115
        %p229 = pneg %p112
        %s230 = sand.u32 %s102, 1
        %s231 = scalar_lea.sflag [#allocation4], %s230
        %s232 = sand.u32 %s102, 1
        %s233 = smul.addr %s232, 8
        %s234 = scalar_lea.vmem [#allocation8], %s233
        %v236 = vld [vmem:[#allocation2] sm:$0xff]
        %v237 = vld [vmem:[#allocation2 + $0x8] sm:$0xf]
        %v238 = vld [vmem:[%s198] sm:$0xf]
        %v239 = vld [vmem:[%s198 + $0x4] sm:$0xf]
        %v240 = vld [vmem:[%s198 + $0x8] sm:$0xf]
        %v241 = vld [vmem:[%s198 + $0xc] sm:$0xf]
        %v242 = vld [vmem:[%s198 + $0x10] sm:$0xf]
        %v243 = vld [vmem:[%s198 + $0x14] sm:$0xf]
        %v244 = vld [vmem:[%s198 + $0x18] sm:$0xf]
        %v245 = vld [vmem:[%s198 + $0x1c] sm:$0xf]
        %v246 = vld [vmem:[%s198 + $0x20] sm:$0xf]
        %v247 = vld [vmem:[%s198 + $0x24] sm:$0xf]
        %v248 = vld [vmem:[%s198 + $0x28] sm:$0xf]
        %v249 = vld [vmem:[%s198 + $0x2c] sm:$0xf]
        %v250 = vld [vmem:[%s198 + $0x30] sm:$0xf]
        %v251 = vld [vmem:[%s198 + $0x34] sm:$0xf]
        %v252 = vld [vmem:[%s198 + $0x38] sm:$0xf]
        %v253 = vld [vmem:[%s198 + $0x3c] sm:$0xf]
        %v254 = vld [vmem:[%s198 + $0x40] sm:$0xf]
        %v255 = vld [vmem:[%s198 + $0x44] sm:$0xf]
        %v256 = vld [vmem:[%s198 + $0x48] sm:$0xf]
        %v257 = vld [vmem:[%s198 + $0x4c] sm:$0xf]
        %v258 = vld [vmem:[%s198 + $0x50] sm:$0xf]
        %v259 = vld [vmem:[%s198 + $0x54] sm:$0xf]
        %v260 = vld [vmem:[%s198 + $0x58] sm:$0xf]
        %v261 = vld [vmem:[%s198 + $0x5c] sm:$0xf]
        %v262 = vld [vmem:[%s198 + $0x60] sm:$0xf]
        %v263 = vld [vmem:[%s198 + $0x64] sm:$0xf]
        %v264 = vld [vmem:[%s198 + $0x68] sm:$0xf]
        %v265 = vld [vmem:[%s198 + $0x6c] sm:$0xf]
        %v266 = vld [vmem:[%s198 + $0x70] sm:$0xf]
        %v267 = vld [vmem:[%s198 + $0x74] sm:$0xf]
        %v268 = vld [vmem:[%s198 + $0x78] sm:$0xf]
        %v269 = vld [vmem:[%s198 + $0x7c] sm:$0xf]
        %v270 = vld [vmem:[%s198 + $0x80] sm:$0xf]
        %v271 = vld [vmem:[%s198 + $0x84] sm:$0xf]
        %v272 = vld [vmem:[%s198 + $0x88] sm:$0xf]
        %v273 = vld [vmem:[%s198 + $0x8c] sm:$0xf]
        %v274 = vld [vmem:[%s198 + $0x90] sm:$0xf]
        %v275 = vld [vmem:[%s198 + $0x94] sm:$0xf]
        %v276 = vld [vmem:[%s198 + $0x98] sm:$0xf]
        %v277 = vld [vmem:[%s198 + $0x9c] sm:$0xf]
        %v278 = vld [vmem:[%s198 + $0xa0] sm:$0xf]
        %v279 = vld [vmem:[%s198 + $0xa4] sm:$0xf]
        %v280 = vld [vmem:[%s198 + $0xa8] sm:$0xf]
        %v281 = vld [vmem:[%s198 + $0xac] sm:$0xf]
        %v282 = vld [vmem:[%s198 + $0xb0] sm:$0xf]
        %v283 = vld [vmem:[%s198 + $0xb4] sm:$0xf]
        %v284 = vld [vmem:[%s198 + $0xb8] sm:$0xf]
        %v285 = vld [vmem:[%s198 + $0xbc] sm:$0xf]
        %v288 = vunpack.c.l.b16 %v236
        %v289 = vunpack.c.h.b16 %v236
        %v290 = vunpack.c.l.b16 %v237
        %v291 = vpack.c.b16 %v288, %v288
        %v292 = vpack.c.b16 %v289, %v289
        %v293 = vpack.c.b16 %v290, %v290
        %v345 = vunpack.c.l.b16 %v238
        %v346 = vunpack.c.l.b16 %v239
        %v347 = vunpack.c.l.b16 %v240
        %v348 = vunpack.c.l.b16 %v241
        %v349 = vunpack.c.l.b16 %v242
        %v350 = vunpack.c.l.b16 %v243
        %v351 = vunpack.c.l.b16 %v244
        %v352 = vunpack.c.l.b16 %v245
        %v353 = vunpack.c.l.b16 %v246
        %v354 = vunpack.c.l.b16 %v247
        %v355 = vunpack.c.l.b16 %v248
        %v356 = vunpack.c.l.b16 %v249
        %v357 = vunpack.c.l.b16 %v250
        %v358 = vunpack.c.l.b16 %v251
        %v359 = vunpack.c.l.b16 %v252
        %v360 = vunpack.c.l.b16 %v253
        %v361 = vunpack.c.l.b16 %v254
        %v362 = vunpack.c.l.b16 %v255
        %v363 = vunpack.c.l.b16 %v256
        %v364 = vunpack.c.l.b16 %v257
        %v365 = vunpack.c.l.b16 %v258
        %v366 = vunpack.c.l.b16 %v259
        %v367 = vunpack.c.l.b16 %v260
        %v368 = vunpack.c.l.b16 %v261
        %v369 = vunpack.c.l.b16 %v262
        %v370 = vunpack.c.l.b16 %v263
        %v371 = vunpack.c.l.b16 %v264
        %v372 = vunpack.c.l.b16 %v265
        %v373 = vunpack.c.l.b16 %v266
        %v374 = vunpack.c.l.b16 %v267
        %v375 = vunpack.c.l.b16 %v268
        %v376 = vunpack.c.l.b16 %v269
        %v377 = vunpack.c.l.b16 %v270
        %v378 = vunpack.c.l.b16 %v271
        %v379 = vunpack.c.l.b16 %v272
        %v380 = vunpack.c.l.b16 %v273
        %v381 = vunpack.c.l.b16 %v274
        %v382 = vunpack.c.l.b16 %v275
        %v383 = vunpack.c.l.b16 %v276
        %v384 = vunpack.c.l.b16 %v277
        %v385 = vunpack.c.l.b16 %v278
        %v386 = vunpack.c.l.b16 %v279
        %v387 = vunpack.c.l.b16 %v280
        %v388 = vunpack.c.l.b16 %v281
        %v389 = vunpack.c.l.b16 %v282
        %v390 = vunpack.c.l.b16 %v283
        %v391 = vunpack.c.l.b16 %v284
        %v392 = vunpack.c.l.b16 %v285
        %v393 = vpack.c.b16 %v346, %v345
        %v394 = vpack.c.b16 %v348, %v347
        %v395 = vpack.c.b16 %v350, %v349
        %v396 = vpack.c.b16 %v352, %v351
        %v397 = vpack.c.b16 %v354, %v353
        %v398 = vpack.c.b16 %v356, %v355
        %v399 = vpack.c.b16 %v358, %v357
        %v400 = vpack.c.b16 %v360, %v359
        %v401 = vpack.c.b16 %v362, %v361
        %v402 = vpack.c.b16 %v364, %v363
        %v403 = vpack.c.b16 %v366, %v365
        %v404 = vpack.c.b16 %v368, %v367
        %v405 = vpack.c.b16 %v370, %v369
        %v406 = vpack.c.b16 %v372, %v371
        %v407 = vpack.c.b16 %v374, %v373
        %v408 = vpack.c.b16 %v376, %v375
        %v409 = vpack.c.b16 %v378, %v377
        %v410 = vpack.c.b16 %v380, %v379
        %v411 = vpack.c.b16 %v382, %v381
        %v412 = vpack.c.b16 %v384, %v383
        %v413 = vpack.c.b16 %v386, %v385
        %v414 = vpack.c.b16 %v388, %v387
        %v415 = vpack.c.b16 %v390, %v389
        %v416 = vpack.c.b16 %v392, %v391
        %441 = vmatprep.subr.bf16.mxu0 0
        %442 = vmatpush1.bf16.msra.mxu0 %v393
        %443 = vmatprep.subr.bf16.mxu0 0
        %444 = vmatpush1.bf16.msra.mxu0 %v394
        %445 = vmatprep.subr.bf16.mxu0 0
        %446 = vmatpush1.bf16.msra.mxu0 %v395
        %447 = vmatprep.subr.bf16.mxu0 0
        %448 = vmatpush1.bf16.msra.mxu0 %v396
        %449 = vmatprep.subr.bf16.mxu0 0
        %450 = vmatpush1.bf16.msra.mxu0 %v397
        %451 = vmatprep.subr.bf16.mxu0 0
        %452 = vmatpush1.bf16.msra.mxu0 %v398
        %453 = vmatprep.subr.bf16.mxu0 0
        %454 = vmatpush1.bf16.msra.mxu0 %v399
        %455 = vmatprep.subr.bf16.mxu0 0
        %456 = vmatpush1.bf16.msra.mxu0 %v400
        %457 = vmatprep.subr.bf16.mxu0 0
        %458 = vmatpush1.bf16.msra.mxu0 %v401
        %459 = vmatprep.subr.bf16.mxu0 0
        %460 = vmatpush1.bf16.msra.mxu0 %v402
        %461 = vmatprep.subr.bf16.mxu0 0
        %462 = vmatpush1.bf16.msra.mxu0 %v403
        %463 = vmatprep.subr.bf16.mxu0 0
        %464 = vmatpush1.bf16.msra.mxu0 %v404
        %465 = vmatprep.subr.bf16.mxu0 0
        %466 = vmatpush1.bf16.msra.mxu0 %v405
        %467 = vmatprep.subr.bf16.mxu0 0
        %468 = vmatpush1.bf16.msra.mxu0 %v406
        %469 = vmatprep.subr.bf16.mxu0 0
        %470 = vmatpush1.bf16.msra.mxu0 %v407
        %471 = vmatprep.subr.bf16.mxu0 0
        %472 = vmatpush1.bf16.msra.mxu0 %v408
        %473 = vmatprep.mubr.bf16.mxu0 %v292
        %474 = vmatmul.mubr.bf16.gmra.mrb[0].mxu0 %v291
        %v475 = vpop.f32.mrb[0].mxu0
        %v476 = vadd.f32 0.0, %v475
        %v477 = vpop.f32.mrb[0].mxu0
        %v478 = vpop.f32.mrb[0].mxu0
        %v479 = vpop.f32.mrb[0].mxu0
        %480 = vdwg.mxu0
        %481 = vmatprep.subr.bf16.mxu0 0
        %482 = vmatpush1.bf16.msra.mxu0 %v409
        %483 = vmatprep.subr.bf16.mxu0 0
        %484 = vmatpush1.bf16.msra.mxu0 %v410
        %485 = vmatprep.subr.bf16.mxu0 0
        %486 = vmatpush1.bf16.msra.mxu0 %v411
        %487 = vmatprep.subr.bf16.mxu0 0
        %488 = vmatpush1.bf16.msra.mxu0 %v412
        %489 = vmatprep.subr.bf16.mxu0 0
        %490 = vmatpush1.bf16.msra.mxu0 %v413
        %491 = vmatprep.subr.bf16.mxu0 0
        %492 = vmatpush1.bf16.msra.mxu0 %v414
        %493 = vmatprep.subr.bf16.mxu0 0
        %494 = vmatpush1.bf16.msra.mxu0 %v415
        %495 = vmatprep.subr.bf16.mxu0 0
        %496 = vmatpush1.bf16.msra.mxu0 %v416
        %497 = vmatprep.subr.bf16.mxu0 0
        %498 = vmatpush1.bf16.msra.mxu0 0
        %499 = vmatprep.subr.bf16.mxu0 0
        %500 = vmatpush1.bf16.msra.mxu0 0
        %501 = vmatprep.subr.bf16.mxu0 0
        %502 = vmatpush1.bf16.msra.mxu0 0
        %503 = vmatprep.subr.bf16.mxu0 0
        %504 = vmatpush1.bf16.msra.mxu0 0
        %505 = vmatprep.subr.bf16.mxu0 0
        %506 = vmatpush1.bf16.msra.mxu0 0
        %507 = vmatprep.subr.bf16.mxu0 0
        %508 = vmatpush1.bf16.msra.mxu0 0
        %509 = vmatprep.subr.bf16.mxu0 0
        %510 = vmatpush1.bf16.msra.mxu0 0
        %511 = vmatprep.subr.bf16.mxu0 0
        %512 = vmatpush1.bf16.msra.mxu0 0
        %513 = vmatprep.mubr.bf16.mxu0 0
        %514 = vmatmul.mubr.bf16.gmra.mrb[0].mxu0 %v293
        %v515 = vpop.f32.mrb[0].mxu0
        %v516 = vadd.f32 %v476, %v515
        %v517 = vpop.f32.mrb[0].mxu0
        %v518 = vpop.f32.mrb[0].mxu0
        %v519 = vpop.f32.mrb[0].mxu0
        %520 = vdwg.mxu0
        %v521 = vrot.slane %v516, 4
        %v522 = vadd.f32 %v516, %v521
        %v523 = vrot.slane %v522, 2
        %v524 = vadd.f32 %v522, %v523
        %v525 = vrot.slane %v524, 1
        %v526 = vadd.f32 %v524, %v525
        %v527 = vmul.f32 %v526, 0.125
        %v528 = vsub.f32 %v516, %v527
        %v529 = vmul.f32 %v528, %v528
        %v530 = vrot.slane %v529, 4
        %v531 = vadd.f32 %v529, %v530
        %v532 = vrot.slane %v531, 2
        %v533 = vadd.f32 %v531, %v532
        %v534 = vrot.slane %v533, 1
        %v535 = vadd.f32 %v533, %v534
        %v536 = vmul.f32 %v535, 0.125
        %v537 = vld [vmem:[%s207] sm:$0x1]
        %v538 = vld [vmem:[%s207 + $0x1] sm:$0x1]
        %v539 = vld [vmem:[%s207 + $0x2] sm:$0x1]
        %v540 = vadd.f32 %v536, 1e-05
        %v541 = vrsqrt.pop %v540
        %v542 = vmul.f32 %v537, %v541
        %v543 = vlaneseq
        %v544 = vshrl.u32 %v543, 7
        %v545 = vsub.s32 0, %v544
        %v546 = vrot.slane %v542, %v545
        %v547 = vmul.f32 %v528, %v546
        %v548 = vlaneseq
        %v549 = vshrl.u32 %v548, 7
        %v550 = vsub.s32 0, %v549
        %v551 = vrot.slane %v538, %v550
        %v552 = vadd.f32 %v547, %v551
        %vm553 = vcmp.gt.f32.partialorder %v552, 0.0
        %v554 = vlaneseq
        %v555 = vshrl.u32 %v554, 7
        %v556 = vsub.s32 0, %v555
        %v557 = vrot.slane %v539, %v556
        %v558 = vmul.f32 %v557, %v552
        %v559 = vsel %vm553, %v552, %v558
        %560 = vst [vmem:[%s234] sm:$0xff] %v559
        %s561 = sand.u32 %s102, 1
        %s562 = scalar_lea.sflag [#allocation4], %s561
        %s563 = sand.u32 %s102, 1
        %s564 = smul.addr %s563, 8
        %s565 = scalar_lea.vmem [#allocation8], %s564
        // Predicated region
        $region45: #{tpu_custom_call.1} parent=31 // pred_check
          %p566 = pneg %p112
        $region46: #{tpu_custom_call.1} parent=31 // pred_check_branch
          %568 = sbr.rel (%p566) target = $region48
        $region47: #{tpu_custom_call.1} parent=31 // pred_region
          %s570 = ssub.s32 128, 128
          %571 = vsyncadd %s562, %s570
          %s572 = smul.addr %s21, 128
          %s573 = scalar_lea.hbm %s3, %s572
          %s575 = sshll.u32 %s565, 4
          %s576 = int_to_ptr.vmem [resolvable:$true] %s575
          %578 = dma.vmem_to_hbm [thread:$0]  %s576, 128, %s573, %s562
        $region48: #{tpu_custom_call.1} parent=31 // pred_fallthru
          _
      $region32: #{tpu_custom_call.1} parent=5 // pred_fallthru
        _
      %p579 = scmp.le.s32.totalorder 2, %s16
      // Predicated region
      $region49: #{tpu_custom_call.1} parent=5 // pred_check
        %p580 = pneg %p579
      $region50: #{tpu_custom_call.1} parent=5 // pred_check_branch
        %582 = sbr.rel (%p580) target = $region52
      $region51: #{tpu_custom_call.1} parent=5 // pred_region
        %s583 = ssub.s32 %s16, 2
        // Predicated region
        $region53: #{tpu_custom_call.1} parent=51 // pred_check
          %p584 = pneg %p118
        $region54: #{tpu_custom_call.1} parent=51 // pred_check_branch
          %586 = sbr.rel (%p584) target = $region56
        $region55: #{tpu_custom_call.1} parent=51 // pred_region
          %s587 = sand.u32 %s103, 1
          %s588 = scalar_lea.sflag [#allocation4], %s587
          %s589 = sand.u32 %s103, 1
          %s590 = smul.addr %s589, 8
          %s591 = scalar_lea.vmem [#allocation8], %s590
          %592 = dma.done %s588, 128
        $region56: #{tpu_custom_call.1} parent=51 // pred_fallthru
          _
      $region52: #{tpu_custom_call.1} parent=5 // pred_fallthru
        _
    $region6: #{tpu_custom_call.1} parent=1 // loop_footer
      %s20 = sadd.s32 1, %s16
    $region7: #{tpu_custom_call.1} parent=1 // loop_footer_branch
      %15 = sbr.rel target = $region3
    $region8: #{tpu_custom_call.1} parent=1 // loop_exit
      _
    %593 = vsyncpa [#allocation3], 1
    %s594 = scalar_lea.sflag [#allocation3], 1
    %595 = vsyncpa %s594, 1
    %596 = vsyncpa [#allocation6], 1
    %s597 = scalar_lea.sflag [#allocation6], 1
    %598 = vsyncpa %s597, 1
    %599 = vsyncpa [#allocation4], 1
    %s600 = scalar_lea.sflag [#allocation4], 1
    %601 = vsyncpa %s600, 1

</llo_original>
